<compile_context>
chip_gen: v6e
topology: v6e:2x2x1
jax: 0.10.0
libtpu: 0.0.40
codegen_flags: <defaults>
</compile_context>

<pallas_src>
import numpy as np

import jax
import jax.numpy as jnp
from jax.experimental import pallas as pl
from jax.experimental.pallas import tpu as pltpu


def _round_up(x, m):
    return ((x + m - 1) // m) * m


def _vmem_capacity_bytes():
    """Physical VMEM of the attached TPU generation (fallback: 64 MiB = v7x)."""
    try:
        info = pltpu.get_tpu_info()
        for attr in ("vmem_capacity_bytes", "vmem_bytes", "vmem_size_bytes"):
            v = getattr(info, attr, None)
            if v:
                return int(v)
    except Exception:
        pass
    return 64 * 2 ** 20


# ----------------------------- Pallas kernels --------------------------------
def _linear_kernel(grp_ref, x_ref, w_ref, o_ref):
    """Single-K-chunk fast path: one MXU matmul per row tile."""
    del grp_ref  # only consumed by the index_maps
    o_ref[...] = jnp.dot(
        x_ref[...], w_ref[0], preferred_element_type=jnp.float32
    ).astype(o_ref.dtype)


def _linear_kernel_ktiled(grp_ref, x_ref, w_ref, o_ref, acc_ref):
    """K-tiled path: accumulate F chunks in an f32 VMEM scratch."""
    del grp_ref
    k = pl.program_id(1)

    @pl.when(k == 0)
    def _():
        acc_ref[...] = jnp.zeros_like(acc_ref)

    acc_ref[...] += jnp.dot(x_ref[...], w_ref[0],
                            preferred_element_type=jnp.float32)

    @pl.when(k == pl.num_programs(1) - 1)
    def _():
        o_ref[...] = acc_ref[...].astype(o_ref.dtype)


def _fused_linear(grp, x_packed, w_stack, *, tm, kc, vmem_limit, cost):
    """y[b*tm:(b+1)*tm] = x_packed row-tile @ w_stack[grp[b]], K-tiled over F."""
    rows_pad, F_pad = x_packed.shape
    _, _, T = w_stack.shape
    num_row_blocks = rows_pad // tm
    num_k = F_pad // kc

    x_spec = pl.BlockSpec((tm, kc), lambda b, k, g_ref: (b, k))
    w_spec = pl.BlockSpec((1, kc, T), lambda b, k, g_ref: (g_ref[b], k, 0))
    o_spec = pl.BlockSpec((tm, T), lambda b, k, g_ref: (b, 0))

    if num_k == 1:
        kernel = _linear_kernel
        scratch = []
    else:
        kernel = _linear_kernel_ktiled
        scratch = [pltpu.VMEM((tm, T), jnp.float32)]

    return pl.pallas_call(
        kernel,
        out_shape=jax.ShapeDtypeStruct((rows_pad, T), x_packed.dtype),
        grid_spec=pltpu.PrefetchScalarGridSpec(
            num_scalar_prefetch=1,
            grid=(num_row_blocks, num_k),
            in_specs=[x_spec, w_spec],
            out_specs=o_spec,
            scratch_shapes=scratch,
        ),
        compiler_params=pltpu.CompilerParams(
            # TODO(synk): confirm on v7x xprof that the row-tile axis shards across
            # both TensorCores; switch to pltpu.CORE_PARALLEL if one TC sits idle.
            dimension_semantics=("parallel", "arbitrary"),
            vmem_limit_bytes=vmem_limit,
        ),
        cost_estimate=cost,
    )(grp, x_packed, w_stack)


# ----------------------------- ConvLinear port -------------------------------
def _compute_counts(L):
    counts = [0] * (L + 1)
    for l2 in range(L + 1):
        for l1 in range(l2 + 1):
            lmin = l2 - l1
            lmax = l1 + l2 if L >= l1 + l2 else L
            for l in range(lmin, lmax + 1):
                counts[l] += 1
    return counts


class ConvLinear:
    """JAX/Pallas port of the PyTorch ConvLinear module (bias-free Linears)."""

    def __init__(self, L, T, n, Nconv, key, dtype=jnp.float32,
                 max_row_tile=256, max_k_tile=1024):
        if L < 0:
            raise ValueError("L must be greater than or equal to zero")
        if T <= 0:
            raise ValueError("T must be greater than zero")
        if n <= 0:
            raise ValueError("n must be greater than or equal to zero")
        if Nconv <= 0:
            raise ValueError("Nconv must be greater than zero")
        self.L, self.T, self.n, self.Nconv = L, T, n, Nconv
        self.dtype = jnp.dtype(dtype)
        self.max_row_tile = int(max_row_tile)

        counts = _compute_counts(L)
        tls = [c * T * T for c in counts]
        if n == Nconv:
            in_features = [tls[0]]
        elif n == 1:
            in_features = list(counts)
        else:
            in_features = list(tls)
        self.in_features = in_features
        G = len(in_features)

        # K (feature) tiling: pad F to F_pad, split into chunks of kc (<= max_k_tile,
        # always a multiple of 128, and always an exact divisor of F_pad).
        f_max = max(in_features)
        max_k_tile = max(128, _round_up(int(max_k_tile), 128))
        if _round_up(f_max, 128) <= max_k_tile:
            self.kc = _round_up(f_max, 128)
            self.F_pad = self.kc
        else:
            self.kc = max_k_tile
            self.F_pad = _round_up(f_max, max_k_tile)

        # Deterministic init mimicking nn.Linear default U(-1/sqrt(F), 1/sqrt(F)).
        self.weights = []   # (T, F_l): PyTorch convention (used by forward_ref)
        w_stack = jnp.zeros((G, self.F_pad, T), dtype=self.dtype)
        for g, in_f in enumerate(in_features):
            key, sub = jax.random.split(key)
            bound = 1.0 / float(np.sqrt(in_f))
            w = jax.random.uniform(sub, (T, in_f), dtype=jnp.float32,
                                   minval=-bound, maxval=bound)
            self.weights.append(w)
            w_stack = w_stack.at[g, :in_f, :].set(
                jnp.transpose(w).astype(self.dtype))
        self.w_stack = w_stack

        self._forward_jit = jax.jit(self._forward_impl)

    # ------------------------------------------------------------------ #
    def _pick_row_tile(self, Ms):
        esize = self.dtype.itemsize
        row_align = 16 if esize == 2 else 8          # sublane packing for bf16
        tm = min(self.max_row_tile, _round_up(max(Ms), row_align))
        tm = max(row_align, (tm // row_align) * row_align)

        cap = _vmem_capacity_bytes()
        budget = max(32 * 2 ** 20, (cap * 3) // 4)   # ~48 MiB v7x, ~96 MiB v5e/v6e
        t_vmem = _round_up(self.T, 128)              # lane padding inside VMEM

        def footprint(m):
            return (2 * m * self.kc * esize          # x tile (double buffered)
                    + 2 * self.kc * t_vmem * esize   # weight chunk (double buffered)
                    + 2 * m * t_vmem * esize         # output tile
                    + m * t_vmem * 4)                # f32 accumulator scratch

        while footprint(tm) > budget and tm > row_align:
            tm = max(row_align, (tm // 2 // row_align) * row_align)
        fp = footprint(tm)
        vmem_limit = int(min(fp + 16 * 2 ** 20, cap - 4 * 2 ** 20))
        assert fp <= vmem_limit, "VMEM footprint exceeds limit; tiles too large"
        return tm, vmem_limit

    def _forward_impl(self, w_stack, *Hls):
        G = len(self.in_features)
        assert len(Hls) >= G, "need one input per degree"
        Ms = [int(Hls[g].shape[0]) for g in range(G)]
        for g in range(G):
            assert Hls[g].shape[1] == self.in_features[g], \
                "bad feature size for degree l"

        tm, vmem_limit = self._pick_row_tile(Ms)

        # Pack all degrees into one feature-padded, row-padded slab (no OOB reads).
        pieces, offsets, off = [], [], 0
        for g in range(G):
            m, f = Ms[g], self.in_features[g]
            mp = _round_up(m, tm)
            xp = jnp.pad(jnp.asarray(Hls[g], self.dtype),
                         ((0, mp - m), (0, self.F_pad - f)))
            pieces.append(xp)
            offsets.append(off)
            off += mp
        x_packed = jnp.concatenate(pieces, axis=0) if G > 1 else pieces[0]
        rows_pad = off

        # Row-block -> group id (scalar-prefetch, lands in SMEM).
        grp = np.concatenate(
            [np.full(_round_up(m, tm) // tm, g, dtype=np.int32)
             for g, m in enumerate(Ms)])

        esize = self.dtype.itemsize
        cost = pl.CostEstimate(
            flops=2 * rows_pad * self.F_pad * self.T,
            transcendentals=0,
            bytes_accessed=(rows_pad * self.F_pad * esize
                            + (rows_pad // tm) * self.F_pad * self.T * esize
                            + rows_pad * self.T * esize),
        )

        out_pad = _fused_linear(jnp.asarray(grp), x_packed, w_stack,
                                tm=tm, kc=self.kc, vmem_limit=vmem_limit,
                                cost=cost)

        # Strip per-group row padding; under jit these slices fuse downstream.
        if all(m % tm == 0 for m in Ms):
            return out_pad[:sum(Ms)]
        return jnp.concatenate(
            [out_pad[offsets[g]:offsets[g] + Ms[g]] for g in range(G)], axis=0)

    def forward(self, Hls):
        G = len(self.in_features)
        xs = tuple(jnp.asarray(Hls[g]) for g in range(G))
        return self._forward_jit(self.w_stack, *xs)

    # Pure-JAX reference (same math as the PyTorch module) for correctness checks.
    def forward_ref(self, Hls):
        if self.n == self.Nconv:
            return Hls[0] @ self.weights[0].T
        return jnp.concatenate(
            [Hls[l] @ w.T for l, w in enumerate(self.weights)], axis=0)


# --------------------------------- main ---------------------------------------
if __name__ == "__main__":
    key = jax.random.PRNGKey(0)

    # 1) Middle layer (n=2 of 3), L=2, T=4 -> in_features = Counts[l]*T^2 = [48,64,64].
    L, T, n, Nconv = 2, 4, 2, 3
    Ms = [8, 16, 8]
    key, wkey = jax.random.split(key)
    module = ConvLinear(L, T, n, Nconv, wkey)
    Hls = []
    for in_f, M in zip(module.in_features, Ms):
        key, sub = jax.random.split(key)
        Hls.append(jax.random.normal(sub, (M, in_f), dtype=jnp.float32))
    out = jax.block_until_ready(module.forward(Hls))
    ref = module.forward_ref(Hls)
    assert out.shape == (sum(Ms), T)
    assert jnp.allclose(out, ref, atol=1e-5, rtol=1e-5)

    # 2) Last layer (n == Nconv): single Linear on Hls[0].
    key, wkey2, xkey2 = jax.random.split(key, 3)
    module_last = ConvLinear(L, T, Nconv, Nconv, wkey2)
    x0 = jax.random.normal(xkey2, (8, module_last.in_features[0]),
                           dtype=jnp.float32)
    out_last = jax.block_until_ready(module_last.forward([x0]))
    assert out_last.shape == (8, T)
    assert jnp.allclose(out_last, module_last.forward_ref([x0]),
                        atol=1e-5, rtol=1e-5)

    # 3) Exercise the K-tiled accumulator path (small max_k_tile forces num_k > 1).
    key, wkey3 = jax.random.split(key)
    module_k = ConvLinear(2, 8, 2, 3, wkey3, max_k_tile=128)   # F = [192,256,256]
    Hls_k = []
    for in_f in module_k.in_features:
        key, sub = jax.random.split(key)
        Hls_k.append(jax.random.normal(sub, (8, in_f), dtype=jnp.float32))
    out_k = jax.block_until_ready(module_k.forward(Hls_k))
    ref_k = module_k.forward_ref(Hls_k)
    assert out_k.shape == (24, 8)
    assert jnp.allclose(out_k, ref_k, atol=1e-5, rtol=1e-5)

    print("KERNEL_OK")
</pallas_src>

<mosaic_0001>
module attributes {stable_mosaic.version = 11 : i64} {
  func.func @_linear_kernel(%arg0: i32, %arg1: i32, %arg2: memref<3xi32, #tpu.memory_space<smem>>, %arg3: memref<16x128xf32, #tpu.memory_space<vmem>>, %arg4: memref<1x128x4xf32, #tpu.memory_space<vmem>>, %arg5: memref<16x4xf32, #tpu.memory_space<vmem>>) attributes {dimension_semantics = [#tpu.dimension_semantics<parallel>, #tpu.dimension_semantics<arbitrary>], iteration_bounds = array<i64: 3, 1>, scalar_prefetch = 1 : i64, scratch_operands = 0 : i64, tpu.core_type = #tpu.core_type<tc>, window_params = [{transform_indices = @transform_0, window_bounds = array<i64: 16, 128>}, {transform_indices = @transform_1, window_bounds = array<i64: 1, 128, 4>}, {transform_indices = @transform_2, window_bounds = array<i64: 16, 4>}]} {
    %c0 = arith.constant 0 : index
    %c0_0 = arith.constant 0 : index
    %0 = vector.load %arg3[%c0, %c0_0] : memref<16x128xf32, #tpu.memory_space<vmem>>, vector<16x128xf32>
    %c0_1 = arith.constant 0 : index
    %c0_2 = arith.constant 0 : index
    %c0_3 = arith.constant 0 : index
    %1 = vector.load %arg4[%c0_1, %c0_2, %c0_3] : memref<1x128x4xf32, #tpu.memory_space<vmem>>, vector<1x128x4xf32>
    %2 = vector.shape_cast %1 : vector<1x128x4xf32> to vector<128x4xf32>
    %cst = arith.constant dense<0.000000e+00> : vector<16x4xf32>
    %3 = tpu.matmul %0, %2, %cst {dimension_numbers = #tpu.dot_dimension_numbers<[1], [0], [0], [1], [0, 0, 1, 1], [], []>} : vector<16x128xf32>, vector<128x4xf32>, vector<16x4xf32> -> vector<16x4xf32>
    %c0_4 = arith.constant 0 : index
    %c0_5 = arith.constant 0 : index
    %4 = vector.load %arg5[%c0_4, %c0_5] : memref<16x4xf32, #tpu.memory_space<vmem>>, vector<16x4xf32>
    tpu.vector_store %arg5[%c0_4, %c0_5], %3 {strides = array<i32>} : memref<16x4xf32, #tpu.memory_space<vmem>>, vector<16x4xf32>,
    return
  }
  func.func @transform_0(%arg0: i32, %arg1: i32, %arg2: memref<3xi32, #tpu.memory_space<smem>>) -> (i32, i32) {
    %c0_i32 = arith.constant 0 : i32
    return %arg0, %arg1 : i32, i32
  }
  func.func @transform_1(%arg0: i32, %arg1: i32, %arg2: memref<3xi32, #tpu.memory_space<smem>>) -> (i32, i32, i32) {
    %0 = arith.index_cast %arg0 : i32 to index
    %1 = memref.load %arg2[%0] : memref<3xi32, #tpu.memory_space<smem>>
    %c0_i32 = arith.constant 0 : i32
    %c0_i32_0 = arith.constant 0 : i32
    return %1, %arg1, %c0_i32 : i32, i32, i32
  }
  func.func @transform_2(%arg0: i32, %arg1: i32, %arg2: memref<3xi32, #tpu.memory_space<smem>>) -> (i32, i32) {
    %c0_i32 = arith.constant 0 : i32
    %c0_i32_0 = arith.constant 0 : i32
    return %arg0, %c0_i32 : i32, i32
  }
}

</mosaic_0001>

<llo_original>
// kernel: _forward_impl.1
$region0: #{_forward_impl.1}
  #allocation0 [shape = 'u32[]', space=smem, size = 0x4, offset = 0x4, fixed_abs, tag = 'smem constant byte address 0x4 - core index']
  #allocation1 [shape = 'u32[144,128]{1,0:T(1,128)}', space=vmem, size = 0x12000, scoped, tag = 'internal scratch']
  #allocation2 [shape = 's32[1]{0}', space=sflag, size = 0x4, scoped, tag = 'scoped memory for _forward_impl.1']
  #allocation3 [shape = 'u8[512]{0}', space=smem, size = 0x200, scoped, tag = 'prefetched SMEM operand 0']
  %s0 = inlined_call_operand.vmem [shape: s32[3], index: 0, kind: input, shape index: {}]
  %s1 = inlined_call_operand.vmem [shape: f32[48,128], index: 1, kind: input, shape index: {}]
  %s2 = inlined_call_operand.vmem [shape: f32[3,128,4], index: 2, kind: input, shape index: {}]
  %s3 = inlined_call_operand.vmem [shape: f32[48,4], index: 3, kind: output, shape index: {}]
  %s4 = sld [smem:[#allocation0]]
  $region41: #{_forward_impl.1} parent=0
    _
  %s6 = ssub.s32 1, %s4
  %s7 = scalar_select 0, %s6, %s4
  %s8 = sshll.u32 %s0, 4
  %s9 = int_to_ptr.vmem [resolvable:$true] %s8
  %11 = dma.vmem_to_smem %s9, 16, [#allocation3], [#allocation2]
  %12 = dma.done [#allocation2], 16
  %13 = sfence
  loop: start=0, step=1, limit=5
  $region2: #{_forward_impl.1} parent=0 // loop_pre_header
    _
  $region3: #{_forward_impl.1} parent=0 // loop_header
    %s15 = sphi 0, %s19
    %p16 = scmp.ge.s32.totalorder %s15, 5
    %s22 = sphi 0, %s34
    %s23 = sphi 0, %s30
    %s24 = sphi 0, %s22
    %s25 = sphi 0, %s23
    %s26 = sphi 0, %s24
    %s27 = sphi 0, %s25
    %s39 = sphi 0, %s41
    %s42 = sphi 0, %s39
    %s43 = sphi 0, %s42
    %s59 = sphi 0, %s43
    %s69 = sphi 0, %s71
    %s72 = sphi 0, %s69
    %s73 = sphi 0, %s72
    %s89 = sphi 0, %s73
    %s95 = sphi 0, %s97
    %s98 = sphi 0, %s95
    %s99 = sphi 0, %s98
    %s115 = sphi 0, %s99
  $region4: #{_forward_impl.1} parent=0 // loop_header_branch
    %18 = sbr.rel (%p16) target = $region8
  $region5: #{_forward_impl.1} parent=0 // loop_body
    %s20 = ssub.s32 %s15, 1
    %s21 = ssub.s32 %s15, 2
    %s28 = sadd.s32 1, %s23
    %p29 = scmp.ge.s32.totalorder %s28, 1
    %s30 = scalar_select %p29, 0, %s28
    %s31 = sadd.s32 1, %s22
    %s32 = scalar_select %p29, %s31, %s22
    %p33 = scmp.ge.s32.totalorder %s32, 3
    %s34 = scalar_select %p33, 0, %s32
    %s35 = ssub.s32 %s22, %s34
    %s36 = ssub.s32 %s23, %s30
    %s37 = sor.u32 %s35, %s36
    %p38 = scmp.eq.s32.totalorder %s37, 0
    %s40 = sadd.s32 %s39, 1
    %s41 = scalar_select %p38, %s39, %s40
    %p44 = pneg %p38
    %p45 = scmp.eq.s32.totalorder %s15, 2
    %p46 = por %p44, %p45
    %p47 = scmp.ne.s32.totalorder %s39, %s42
    %p48 = scmp.eq.s32.totalorder %s15, 0
    %p49 = por %p47, %p48
    %p50 = scmp.ne.s32.totalorder %s39, %s42
    %p51 = scmp.eq.s32.totalorder %s20, 2
    %p52 = por %p50, %p51
    %p53 = scmp.ne.s32.totalorder %s42, %s43
    %p54 = scmp.eq.s32.totalorder %s20, 0
    %p55 = por %p53, %p54
    %p56 = scmp.ne.s32.totalorder %s42, %s43
    %p57 = scmp.eq.s32.totalorder %s21, 2
    %p58 = por %p56, %p57
    %p60 = scmp.ne.s32.totalorder %s43, %s59
    %p61 = scmp.eq.s32.totalorder %s21, 0
    %p62 = por %p60, %p61
    %s63 = sld [smem:[#allocation3 + %s22]]
    %s64 = sld [smem:[#allocation3 + %s34]]
    %s65 = ssub.s32 %s63, %s64
    %s66 = ssub.s32 %s23, %s30
    %s67 = sor.u32 %s65, %s66
    %p68 = scmp.eq.s32.totalorder %s67, 0
    %s70 = sadd.s32 %s69, 1
    %s71 = scalar_select %p68, %s69, %s70
    %p74 = pneg %p68
    %p75 = scmp.eq.s32.totalorder %s15, 2
    %p76 = por %p74, %p75
    %p77 = scmp.ne.s32.totalorder %s69, %s72
    %p78 = scmp.eq.s32.totalorder %s15, 0
    %p79 = por %p77, %p78
    %p80 = scmp.ne.s32.totalorder %s69, %s72
    %p81 = scmp.eq.s32.totalorder %s20, 2
    %p82 = por %p80, %p81
    %p83 = scmp.ne.s32.totalorder %s72, %s73
    %p84 = scmp.eq.s32.totalorder %s20, 0
    %p85 = por %p83, %p84
    %p86 = scmp.ne.s32.totalorder %s72, %s73
    %p87 = scmp.eq.s32.totalorder %s21, 2
    %p88 = por %p86, %p87
    %p90 = scmp.ne.s32.totalorder %s73, %s89
    %p91 = scmp.eq.s32.totalorder %s21, 0
    %p92 = por %p90, %p91
    %s93 = ssub.s32 %s22, %s34
    %p94 = scmp.eq.s32.totalorder %s93, 0
    %s96 = sadd.s32 %s95, 1
    %s97 = scalar_select %p94, %s95, %s96
    %p100 = pneg %p94
    %p101 = scmp.eq.s32.totalorder %s15, 2
    %p102 = por %p100, %p101
    %p103 = scmp.ne.s32.totalorder %s95, %s98
    %p104 = scmp.eq.s32.totalorder %s15, 0
    %p105 = por %p103, %p104
    %p106 = scmp.ne.s32.totalorder %s95, %s98
    %p107 = scmp.eq.s32.totalorder %s20, 2
    %p108 = por %p106, %p107
    %p109 = scmp.ne.s32.totalorder %s98, %s99
    %p110 = scmp.eq.s32.totalorder %s20, 0
    %p111 = por %p109, %p110
    %p112 = scmp.ne.s32.totalorder %s98, %s99
    %p113 = scmp.eq.s32.totalorder %s21, 2
    %p114 = por %p112, %p113
    %p116 = scmp.ne.s32.totalorder %s99, %s115
    %p117 = scmp.eq.s32.totalorder %s21, 0
    %p118 = por %p116, %p117
    %p119 = scmp.le.s32.totalorder 1, %s15
    %p120 = scmp.lt.s32.totalorder %s15, 4
    %p121 = pnand %p119, %p120
    %p122 = pneg %p121
    // Predicated region
    $region9: #{_forward_impl.1} parent=5 // pred_check
      _
    $region10: #{_forward_impl.1} parent=5 // pred_check_branch
      %124 = sbr.rel (%p121) target = $region12
    $region11: #{_forward_impl.1} parent=5 // pred_region
      %s125 = ssub.s32 %s15, 1
    $region12: #{_forward_impl.1} parent=5 // pred_fallthru
      _
    %p126 = scmp.lt.s32.totalorder %s15, 3
    // Predicated region
    $region13: #{_forward_impl.1} parent=5 // pred_check
      %p127 = pneg %p126
    $region14: #{_forward_impl.1} parent=5 // pred_check_branch
      %129 = sbr.rel (%p127) target = $region16
    $region15: #{_forward_impl.1} parent=5 // pred_region
      // Predicated region
      $region17: #{_forward_impl.1} parent=15 // pred_check
        %p130 = pneg %p49
      $region18: #{_forward_impl.1} parent=15 // pred_check_branch
        %132 = sbr.rel (%p130) target = $region20
      $region19: #{_forward_impl.1} parent=15 // pred_region
        %s133 = smul.u32 2, %s22
        %p134 = scmp.lt.s32.totalorder %s133, 5
        %s135 = scalar_select %p134, %s133, 5
        %p136 = scmp.lt.s32.totalorder %s23, 0
        %s137 = scalar_select %p136, %s23, 0
        %s138 = sadd.s32 %s137, %s135
        %s139 = smul.addr %s138, 8
        %s140 = scalar_lea.vmem %s1, %s139
        %s141 = smul.u32 2, %s22
      $region20: #{_forward_impl.1} parent=15 // pred_fallthru
        _
      // Predicated region
      $region21: #{_forward_impl.1} parent=15 // pred_check
        %p142 = pneg %p79
      $region22: #{_forward_impl.1} parent=15 // pred_check_branch
        %144 = sbr.rel (%p142) target = $region24
      $region23: #{_forward_impl.1} parent=15 // pred_region
        %s145 = sld [smem:[#allocation3 + %s22]]
        %s146 = smul.u32 16, %s23
        %p147 = scmp.lt.s32.totalorder %s145, 2
        %s148 = scalar_select %p147, %s145, 2
        %p149 = scmp.lt.s32.totalorder %s146, 15
        %s150 = scalar_select %p149, %s146, 15
        %s151 = smul.addr %s148, 16
        %s152 = sadd.s32 %s150, %s151
        %s153 = smul.addr %s152, 8
        %s154 = scalar_lea.vmem %s2, %s153
        %s155 = sld [smem:[#allocation3 + %s22]]
        %s156 = smul.u32 16, %s23
      $region24: #{_forward_impl.1} parent=15 // pred_fallthru
        _
    $region16: #{_forward_impl.1} parent=5 // pred_fallthru
      _
    %p157 = scmp.le.s32.totalorder 1, %s15
    %p158 = scmp.lt.s32.totalorder %s15, 4
    %p159 = pnand %p157, %p158
    %p160 = pneg %p159
    // Predicated region
    $region25: #{_forward_impl.1} parent=5 // pred_check
      _
    $region26: #{_forward_impl.1} parent=5 // pred_check_branch
      %162 = sbr.rel (%p159) target = $region28
    $region27: #{_forward_impl.1} parent=5 // pred_region
      %s163 = ssub.s32 %s15, 1
      %s164 = smul.u32 2, %s24
      %p165 = scmp.lt.s32.totalorder %s164, 5
      %s166 = scalar_select %p165, %s164, 5
      %p167 = scmp.lt.s32.totalorder %s25, 0
      %s168 = scalar_select %p167, %s25, 0
      %s169 = sadd.s32 %s168, %s166
      %s170 = smul.addr %s169, 8
      %s171 = scalar_lea.vmem %s1, %s170
      %p172 = pneg %p55
      %p173 = pneg %p52
      %s174 = sld [smem:[#allocation3 + %s24]]
      %s175 = smul.u32 16, %s25
      %p176 = scmp.lt.s32.totalorder %s174, 2
      %s177 = scalar_select %p176, %s174, 2
      %p178 = scmp.lt.s32.totalorder %s175, 15
      %s179 = scalar_select %p178, %s175, 15
      %s180 = smul.addr %s177, 16
      %s181 = sadd.s32 %s179, %s180
      %s182 = smul.addr %s181, 8
      %s183 = scalar_lea.vmem %s2, %s182
      %p184 = pneg %p85
      %p185 = pneg %p82
      %p186 = pneg %p111
      %p187 = pneg %p108
      %s188 = smul.u32 2, %s24
      %p189 = scmp.lt.s32.totalorder %s188, 5
      %s190 = scalar_select %p189, %s188, 5
      %s191 = smul.addr %s190, 8
      %s192 = scalar_lea.vmem %s3, %s191
      %s193 = smul.u32 2, %s24
      %p194 = scmp.lt.s32.totalorder %s193, 5
      %s195 = scalar_select %p194, %s193, 5
      %p196 = scmp.lt.s32.totalorder %s25, 0
      %s197 = scalar_select %p196, %s25, 0
      %s198 = sadd.s32 %s197, %s195
      %s199 = smul.addr %s198, 8
      %s200 = scalar_lea.vmem %s1, %s199
      %s201 = smul.u32 2, %s24
      %s202 = sld [smem:[#allocation3 + %s24]]
      %s203 = smul.u32 16, %s25
      %p204 = scmp.lt.s32.totalorder %s202, 2
      %s205 = scalar_select %p204, %s202, 2
      %p206 = scmp.lt.s32.totalorder %s203, 15
      %s207 = scalar_select %p206, %s203, 15
      %s208 = smul.addr %s205, 16
      %s209 = sadd.s32 %s207, %s208
      %s210 = smul.addr %s209, 8
      %s211 = scalar_lea.vmem %s2, %s210
      %s212 = sld [smem:[#allocation3 + %s24]]
      %s213 = smul.u32 16, %s25
      %s214 = smul.u32 2, %s24
      %p215 = scmp.lt.s32.totalorder %s214, 5
      %s216 = scalar_select %p215, %s214, 5
      %s217 = smul.addr %s216, 8
      %s218 = scalar_lea.vmem %s3, %s217
      %s219 = smul.u32 2, %s24
      %v220 = vld [vmem:[%s200] sm:$0xff]
      %v221 = vld [vmem:[%s200 + $0x8] sm:$0xff]
      %v222 = vld [vmem:[%s211] sm:$0xff]
      %v223 = vld [vmem:[%s211 + $0x8] sm:$0xff]
      %v224 = vld [vmem:[%s211 + $0x10] sm:$0xff]
      %v225 = vld [vmem:[%s211 + $0x18] sm:$0xff]
      %v226 = vld [vmem:[%s211 + $0x20] sm:$0xff]
      %v227 = vld [vmem:[%s211 + $0x28] sm:$0xff]
      %v228 = vld [vmem:[%s211 + $0x30] sm:$0xff]
      %v229 = vld [vmem:[%s211 + $0x38] sm:$0xff]
      %v230 = vld [vmem:[%s211 + $0x40] sm:$0xff]
      %v231 = vld [vmem:[%s211 + $0x48] sm:$0xff]
      %v232 = vld [vmem:[%s211 + $0x50] sm:$0xff]
      %v233 = vld [vmem:[%s211 + $0x58] sm:$0xff]
      %v234 = vld [vmem:[%s211 + $0x60] sm:$0xff]
      %v235 = vld [vmem:[%s211 + $0x68] sm:$0xff]
      %v236 = vld [vmem:[%s211 + $0x70] sm:$0xff]
      %v237 = vld [vmem:[%s211 + $0x78] sm:$0xff]
      %238 = vmatprep.subr.mxu0 0.0
      %239 = vmatpush1.msra.mxu0 %v237
      %240 = vmatprep.subr.mxu0 0.0
      %241 = vmatpush1.msra.mxu0 %v236
      %242 = vmatprep.subr.mxu0 0.0
      %243 = vmatpush1.msra.mxu0 %v235
      %244 = vmatprep.subr.mxu0 0.0
      %245 = vmatpush1.msra.mxu0 %v234
      %246 = vmatprep.subr.mxu0 0.0
      %247 = vmatpush1.msra.mxu0 %v233
      %248 = vmatprep.subr.mxu0 0.0
      %249 = vmatpush1.msra.mxu0 %v232
      %250 = vmatprep.subr.mxu0 0.0
      %251 = vmatpush1.msra.mxu0 %v231
      %252 = vmatprep.subr.mxu0 0.0
      %253 = vmatpush1.msra.mxu0 %v230
      %254 = vmatprep.subr.mxu0 0.0
      %255 = vmatpush1.msra.mxu0 %v229
      %256 = vmatprep.subr.mxu0 0.0
      %257 = vmatpush1.msra.mxu0 %v228
      %258 = vmatprep.subr.mxu0 0.0
      %259 = vmatpush1.msra.mxu0 %v227
      %260 = vmatprep.subr.mxu0 0.0
      %261 = vmatpush1.msra.mxu0 %v226
      %262 = vmatprep.subr.mxu0 0.0
      %263 = vmatpush1.msra.mxu0 %v225
      %264 = vmatprep.subr.mxu0 0.0
      %265 = vmatpush1.msra.mxu0 %v224
      %266 = vmatprep.subr.mxu0 0.0
      %267 = vmatpush1.msra.mxu0 %v223
      %268 = vmatprep.subr.mxu0 0.0
      %269 = vmatpush1.msra.mxu0 %v222
      %270 = vmatprep.subr.mxu0 0.0
      %271 = vmatpush2.msra.mxu0 0.0
      %272 = vmatprep.subr.mxu0 0.0
      %273 = vmatpush2.msra.mxu0 0.0
      %274 = vmatprep.subr.mxu0 0.0
      %275 = vmatpush2.msra.mxu0 0.0
      %276 = vmatprep.subr.mxu0 0.0
      %277 = vmatpush2.msra.mxu0 0.0
      %278 = vmatprep.subr.mxu0 0.0
      %279 = vmatpush2.msra.mxu0 0.0
      %280 = vmatprep.subr.mxu0 0.0
      %281 = vmatpush2.msra.mxu0 0.0
      %282 = vmatprep.subr.mxu0 0.0
      %283 = vmatpush2.msra.mxu0 0.0
      %284 = vmatprep.subr.mxu0 0.0
      %285 = vmatpush2.msra.mxu0 0.0
      %286 = vmatprep.subr.mxu0 0.0
      %287 = vmatpush2.msra.mxu0 0.0
      %288 = vmatprep.subr.mxu0 0.0
      %289 = vmatpush2.msra.mxu0 0.0
      %290 = vmatprep.subr.mxu0 0.0
      %291 = vmatpush2.msra.mxu0 0.0
      %292 = vmatprep.subr.mxu0 0.0
      %293 = vmatpush2.msra.mxu0 0.0
      %294 = vmatprep.subr.mxu0 0.0
      %295 = vmatpush2.msra.mxu0 0.0
      %296 = vmatprep.subr.mxu0 0.0
      %297 = vmatpush2.msra.mxu0 0.0
      %298 = vmatprep.subr.mxu0 0.0
      %299 = vmatpush2.msra.mxu0 0.0
      %300 = vmatprep.subr.mxu0 0.0
      %301 = vmatpush2.msra.mxu0 0.0
      %302 = vmatprep.mubr.f32.mxu0 0.0
      %303 = vmatmul.mubr.f32.gmra.mxu0 %v220
      %v304 = vpop.f32.mrf.mxu0
      %v305 = vadd.f32 0.0, %v304
      %v306 = vpop.f32.mrf.mxu0
      %307 = vmatprep.mubr.f32.mxu0 0.0
      %308 = vmatmul.mubr.f32.gmra.mxu0 %v221
      %v309 = vpop.f32.mrf.mxu0
      %v310 = vadd.f32 0.0, %v309
      %v311 = vpop.f32.mrf.mxu0
      %312 = vdwg.mxu0
      %vm313 = vcmask 31744
      %314 = vst.msk [vmem:[%s218] sm:$0xff] %vm313, %v305
      %315 = vst.msk [vmem:[%s218 + $0x8] sm:$0xff] %vm313, %v310
      %s316 = smul.u32 2, %s24
      %p317 = scmp.lt.s32.totalorder %s316, 5
      %s318 = scalar_select %p317, %s316, 5
      %s319 = smul.addr %s318, 8
      %s320 = scalar_lea.vmem %s3, %s319
      // Predicated region
      $region29: #{_forward_impl.1} parent=27 // pred_check
        %p321 = pneg %p108
      $region30: #{_forward_impl.1} parent=27 // pred_check_branch
        %323 = sbr.rel (%p321) target = $region32
      $region31: #{_forward_impl.1} parent=27 // pred_region
        %s324 = smul.u32 2, %s24
      $region32: #{_forward_impl.1} parent=27 // pred_fallthru
        _
    $region28: #{_forward_impl.1} parent=5 // pred_fallthru
      _
    %p325 = scmp.le.s32.totalorder 2, %s15
    // Predicated region
    $region33: #{_forward_impl.1} parent=5 // pred_check
      %p326 = pneg %p325
    $region34: #{_forward_impl.1} parent=5 // pred_check_branch
      %328 = sbr.rel (%p326) target = $region36
    $region35: #{_forward_impl.1} parent=5 // pred_region
      %s329 = ssub.s32 %s15, 2
      // Predicated region
      $region37: #{_forward_impl.1} parent=35 // pred_check
        %p330 = pneg %p114
      $region38: #{_forward_impl.1} parent=35 // pred_check_branch
        %332 = sbr.rel (%p330) target = $region40
      $region39: #{_forward_impl.1} parent=35 // pred_region
        %s333 = smul.u32 2, %s26
        %p334 = scmp.lt.s32.totalorder %s333, 5
        %s335 = scalar_select %p334, %s333, 5
        %s336 = smul.addr %s335, 8
        %s337 = scalar_lea.vmem %s3, %s336
      $region40: #{_forward_impl.1} parent=35 // pred_fallthru
        _
    $region36: #{_forward_impl.1} parent=5 // pred_fallthru
      _
  $region6: #{_forward_impl.1} parent=0 // loop_footer
    %s19 = sadd.s32 1, %s15
  $region7: #{_forward_impl.1} parent=0 // loop_footer_branch
    %14 = sbr.rel target = $region3
  $region8: #{_forward_impl.1} parent=0 // loop_exit
    _

</llo_original>
